<compile_context>
chip_gen: v7x
topology: tpu7x:2x2x1
jax: 0.10.0
libtpu: 0.0.40
codegen_flags: <defaults>
</compile_context>

<pallas_src>
import jax
import jax.numpy as jnp
from jax import lax
from jax.experimental import pallas as pl
from jax.experimental.pallas import tpu as pltpu

_LANE = 128
_SUBLANE = 8


def _round_up(x, m):
    return ((x + m - 1) // m) * m


def _vmem_capacity_bytes():
    try:
        return int(pltpu.get_tpu_info().vmem_capacity_bytes)
    except Exception:
        return 64 * 1024 * 1024  # conservative fallback (v7x-class per-TC VMEM)


def _block_spec(shape, index_map, single_buffer=False):
    # Constant-index (resident) operands don't need double buffering; falling
    # back to a plain BlockSpec keeps the kernel runnable if pipeline_mode /
    # Buffered(1) is unsupported in the installed JAX.
    if single_buffer:
        return pl.BlockSpec(shape, index_map, pipeline_mode=pl.Buffered(1))
    return pl.BlockSpec(shape, index_map)


# ---------------------------------------------------------------------------
# Fast path: W^T and bias resident in VMEM, x / out streamed as row tiles.
# ---------------------------------------------------------------------------
def _resident_kernel(x_ref, wt_ref, b_ref, o_ref):
    # x_ref: (tm, nfeat), wt_ref: (nfeat, nclass), b_ref: (1, nclass) f32
    acc = jnp.dot(x_ref[...], wt_ref[...], preferred_element_type=jnp.float32)
    o_ref[...] = (acc + b_ref[...]).astype(o_ref.dtype)


def _forward_resident(x, wt, b2, *, tm, budget, vmem_cap, w_vmem_bytes):
    N, nfeat = x.shape
    nclass = wt.shape[1]
    in_isz = jnp.dtype(x.dtype).itemsize
    out_isz = in_isz  # output is x.dtype

    nfeat_l = _round_up(nfeat, _LANE)
    nclass_l = _round_up(nclass, _LANE)

    tm = max(_SUBLANE, min(tm, _round_up(N, _SUBLANE)))

    def working_set(t):
        return (2 * t * nfeat_l * in_isz        # double-buffered x tiles
                + 2 * t * nclass_l * out_isz    # double-buffered out tiles
                + w_vmem_bytes                  # resident W^T (counted 2x, see caller)
                + 2 * nclass_l * 4)             # bias

    while tm > _SUBLANE and working_set(tm) > budget:
        tm //= 2
    tm = max(_SUBLANE, (tm // _SUBLANE) * _SUBLANE)

    grid = (pl.cdiv(N, tm),)
    vmem_limit = int(min(max(2 * working_set(tm), 32 * 1024 * 1024), vmem_cap))

    cost = pl.CostEstimate(
        flops=2 * N * nfeat * nclass,
        transcendentals=0,
        bytes_accessed=(N * nfeat * in_isz + nfeat * nclass * in_isz
                        + nclass * 4 + N * nclass * out_isz),
    )

    def call(single_buffer_residents):
        return pl.pallas_call(
            _resident_kernel,
            out_shape=jax.ShapeDtypeStruct((N, nclass), x.dtype),
            grid=grid,
            in_specs=[
                pl.BlockSpec((tm, nfeat), lambda i: (i, 0)),            # x row tile
                _block_spec((nfeat, nclass), lambda i: (0, 0),
                            single_buffer_residents),                   # resident W^T
                _block_spec((1, nclass), lambda i: (0, 0),
                            single_buffer_residents),                   # resident bias
            ],
            out_specs=pl.BlockSpec((tm, nclass), lambda i: (i, 0)),
            compiler_params=pltpu.CompilerParams(
                dimension_semantics=("parallel",),
                vmem_limit_bytes=vmem_limit,
            ),
            cost_estimate=cost,
        )(x, wt, b2)

    try:
        return call(True)
    except Exception:
        return call(False)


# ---------------------------------------------------------------------------
# Large-weight path: K-tiled accumulation (guards v7x's 64 MiB VMEM).
# ---------------------------------------------------------------------------
def _make_ktiled_kernel(nfeat, tk):
    ragged_k = (nfeat % tk) != 0

    def kernel(x_ref, wt_ref, b_ref, o_ref, acc_ref):
        k = pl.program_id(1)

        @pl.when(k == 0)
        def _():
            acc_ref[...] = jnp.zeros_like(acc_ref)

        xt = x_ref[...]
        wk = wt_ref[...]
        if ragged_k:
            # Edge reads past nfeat are undefined -> mask BOTH operands so
            # garbage (possibly NaN) never reaches the contraction.
            rem = nfeat - k * tk
            col = lax.broadcasted_iota(jnp.int32, xt.shape, 1)
            xt = jnp.where(col < rem, xt, jnp.zeros_like(xt))
            row = lax.broadcasted_iota(jnp.int32, wk.shape, 0)
            wk = jnp.where(row < rem, wk, jnp.zeros_like(wk))

        acc_ref[...] += jnp.dot(xt, wk, preferred_element_type=jnp.float32)

        @pl.when(k == pl.num_programs(1) - 1)
        def _():
            o_ref[...] = (acc_ref[...] + b_ref[...]).astype(o_ref.dtype)

    return kernel


def _forward_ktiled(x, wt, b2, *, tm, tk, budget, vmem_cap):
    N, nfeat = x.shape
    nclass = wt.shape[1]
    isz = jnp.dtype(x.dtype).itemsize
    nclass_l = _round_up(nclass, _LANE)

    tm = max(_SUBLANE, min(tm, _round_up(N, _SUBLANE)))
    tk = max(_LANE, min((tk // _LANE) * _LANE, _round_up(nfeat, _LANE)))

    def working_set(t, k):
        return (2 * t * k * isz                 # x tiles
                + 2 * k * nclass_l * isz        # W^T K-slabs
                + t * nclass_l * 4              # f32 accumulator scratch
                + 2 * t * nclass_l * isz        # out tiles
                + 2 * nclass_l * 4)             # bias

    while working_set(tm, tk) > budget and (tm > _SUBLANE or tk > _LANE):
        if tk >= tm and tk > _LANE:
            tk //= 2
        elif tm > _SUBLANE:
            tm //= 2
        else:
            tk //= 2
    tm = max(_SUBLANE, (tm // _SUBLANE) * _SUBLANE)
    tk = max(_LANE, (tk // _LANE) * _LANE)

    grid = (pl.cdiv(N, tm), pl.cdiv(nfeat, tk))   # reduction axis last
    vmem_limit = int(min(max(2 * working_set(tm, tk), 32 * 1024 * 1024), vmem_cap))

    cost = pl.CostEstimate(
        flops=2 * N * nfeat * nclass,
        transcendentals=0,
        bytes_accessed=(N * nfeat * isz + grid[0] * nfeat * nclass * isz
                        + nclass * 4 + N * nclass * isz),
    )

    return pl.pallas_call(
        _make_ktiled_kernel(nfeat, tk),
        out_shape=jax.ShapeDtypeStruct((N, nclass), x.dtype),
        grid=grid,
        in_specs=[
            pl.BlockSpec((tm, tk), lambda i, k: (i, k)),        # x tile
            pl.BlockSpec((tk, nclass), lambda i, k: (k, 0)),    # W^T K-slab
            pl.BlockSpec((1, nclass), lambda i, k: (0, 0)),     # bias
        ],
        out_specs=pl.BlockSpec((tm, nclass), lambda i, k: (i, 0)),
        scratch_shapes=[pltpu.VMEM((tm, nclass), jnp.float32)],
        compiler_params=pltpu.CompilerParams(
            dimension_semantics=("parallel", "arbitrary"),
            vmem_limit_bytes=vmem_limit,
        ),
        cost_estimate=cost,
    )(x, wt, b2)


def sgc_forward(x, W, b, *, tm=None, tk=None, max_resident_weight_bytes=None):
    """out = x @ W.T + b  (PyTorch nn.Linear / SGC forward).

    x: (N, nfeat), W: (nclass, nfeat), b: (nclass,) -> (N, nclass) in x.dtype.
    """
    N, nfeat = x.shape
    nclass, nfeat_w = W.shape
    assert nfeat == nfeat_w, "W must be (nclass, nfeat)"
    in_isz = jnp.dtype(x.dtype).itemsize

    # Tiny one-time transforms of the small operands (kernel stays transpose-free).
    wt = W.astype(x.dtype).T                          # (nfeat, nclass)
    b2 = b.astype(jnp.float32).reshape(1, nclass)

    # Generation-aware VMEM budget / defaults.
    cap = _vmem_capacity_bytes()
    if cap >= 96 * 1024 * 1024:        # v5e / v6e class parts (128 MiB VMEM)
        budget = 80 * 1024 * 1024
        vmem_cap = 96 * 1024 * 1024
        default_tm = 2048
    else:                              # v7x class parts (64 MiB VMEM per TC)
        budget = 28 * 1024 * 1024
        vmem_cap = 40 * 1024 * 1024
        default_tm = 1024
    if tm is None:
        tm = default_tm
    if tk is None:
        tk = 512

    # Padded VMEM footprint of the resident W^T, counted x2 in case
    # single-buffering of the constant-index operand is unavailable.
    w_vmem_bytes = (2 * _round_up(nfeat, _SUBLANE)
                    * _round_up(nclass, _LANE) * in_isz)
    if max_resident_weight_bytes is None:
        max_resident_weight_bytes = budget // 2

    if w_vmem_bytes <= max_resident_weight_bytes:
        return _forward_resident(x, wt, b2, tm=tm, budget=budget,
                                 vmem_cap=vmem_cap, w_vmem_bytes=w_vmem_bytes)
    return _forward_ktiled(x, wt, b2, tm=tm, tk=tk, budget=budget,
                           vmem_cap=vmem_cap)


if __name__ == "__main__":
    key = jax.random.PRNGKey(0)
    k1, k2, k3, k4, k5, k6 = jax.random.split(key, 6)

    # --- Test 1: small SGC shapes, resident-weight fast path. ---
    N, nfeat, nclass = 16, 32, 8
    x = jax.random.normal(k1, (N, nfeat), dtype=jnp.float32)
    bound = 1.0 / (nfeat ** 0.5)
    W = jax.random.uniform(k2, (nclass, nfeat), minval=-bound, maxval=bound,
                           dtype=jnp.float32)
    b = jax.random.uniform(k3, (nclass,), minval=-bound, maxval=bound,
                           dtype=jnp.float32)

    out = sgc_forward(x, W, b)
    jax.block_until_ready(out)
    ref = x @ W.T + b
    assert out.shape == (N, nclass)
    assert jnp.allclose(out, ref, atol=1e-4, rtol=1e-4), \
        float(jnp.max(jnp.abs(out - ref)))

    # --- Test 2: force the K-tiled accumulator path with ragged N and K edges. ---
    N2, nfeat2, nclass2 = 200, 200, 10
    x2 = jax.random.normal(k4, (N2, nfeat2), dtype=jnp.float32)
    bound2 = 1.0 / (nfeat2 ** 0.5)
    W2 = jax.random.uniform(k5, (nclass2, nfeat2), minval=-bound2, maxval=bound2,
                            dtype=jnp.float32)
    bias2 = jax.random.uniform(k6, (nclass2,), minval=-bound2, maxval=bound2,
                               dtype=jnp.float32)

    out2 = sgc_forward(x2, W2, bias2, tm=64, tk=128, max_resident_weight_bytes=0)
    jax.block_until_ready(out2)
    ref2 = x2 @ W2.T + bias2
    assert out2.shape == (N2, nclass2)
    assert jnp.allclose(out2, ref2, atol=1e-4, rtol=1e-4), \
        float(jnp.max(jnp.abs(out2 - ref2)))

    # TODO(synk): the module's self.sm (Softmax) is unused in forward(), so it is
    # intentionally not implemented.

    print("KERNEL_OK")
</pallas_src>

<mosaic_0001>
module attributes {stable_mosaic.version = 11 : i64} {
  func.func @_resident_kernel(%arg0: i32, %arg1: memref<16x32xf32, #tpu.memory_space<vmem>>, %arg2: memref<32x8xf32, #tpu.memory_space<vmem>>, %arg3: memref<1x8xf32, #tpu.memory_space<vmem>>, %arg4: memref<16x8xf32, #tpu.memory_space<vmem>>) attributes {dimension_semantics = [#tpu.dimension_semantics<parallel>], iteration_bounds = array<i64: 1>, scalar_prefetch = 0 : i64, scratch_operands = 0 : i64, tpu.core_type = #tpu.core_type<tc>, window_params = [{transform_indices = @transform_0, window_bounds = array<i64: 16, 32>}, {pipeline_mode = #tpu.pipeline_mode<synchronous>, transform_indices = @transform_1, window_bounds = array<i64: 32, 8>}, {pipeline_mode = #tpu.pipeline_mode<synchronous>, transform_indices = @transform_2, window_bounds = array<i64: 1, 8>}, {transform_indices = @transform_3, window_bounds = array<i64: 16, 8>}]} {
    %c0 = arith.constant 0 : index
    %c0_0 = arith.constant 0 : index
    %0 = vector.load %arg1[%c0, %c0_0] : memref<16x32xf32, #tpu.memory_space<vmem>>, vector<16x32xf32>
    %c0_1 = arith.constant 0 : index
    %c0_2 = arith.constant 0 : index
    %1 = vector.load %arg2[%c0_1, %c0_2] : memref<32x8xf32, #tpu.memory_space<vmem>>, vector<32x8xf32>
    %cst = arith.constant dense<0.000000e+00> : vector<16x8xf32>
    %2 = tpu.matmul %0, %1, %cst {dimension_numbers = #tpu.dot_dimension_numbers<[1], [0], [0], [1], [0, 0, 1, 1], [], []>} : vector<16x32xf32>, vector<32x8xf32>, vector<16x8xf32> -> vector<16x8xf32>
    %c0_3 = arith.constant 0 : index
    %c0_4 = arith.constant 0 : index
    %3 = vector.load %arg3[%c0_3, %c0_4] : memref<1x8xf32, #tpu.memory_space<vmem>>, vector<1x8xf32>
    %4 = vector.broadcast %3 : vector<1x8xf32> to vector<16x8xf32>
    %5 = arith.addf %2, %4 : vector<16x8xf32>
    %c0_5 = arith.constant 0 : index
    %c0_6 = arith.constant 0 : index
    %6 = vector.load %arg4[%c0_5, %c0_6] : memref<16x8xf32, #tpu.memory_space<vmem>>, vector<16x8xf32>
    tpu.vector_store %arg4[%c0_5, %c0_6], %5 {strides = array<i32>} : memref<16x8xf32, #tpu.memory_space<vmem>>, vector<16x8xf32>,
    return
  }
  func.func @transform_0(%arg0: i32) -> (i32, i32) {
    %c0_i32 = arith.constant 0 : i32
    %c0_i32_0 = arith.constant 0 : i32
    return %arg0, %c0_i32 : i32, i32
  }
  func.func @transform_1(%arg0: i32) -> (i32, i32) {
    %c0_i32 = arith.constant 0 : i32
    %c0_i32_0 = arith.constant 0 : i32
    %c0_i32_1 = arith.constant 0 : i32
    return %c0_i32, %c0_i32_0 : i32, i32
  }
  func.func @transform_2(%arg0: i32) -> (i32, i32) {
    %c0_i32 = arith.constant 0 : i32
    %c0_i32_0 = arith.constant 0 : i32
    %c0_i32_1 = arith.constant 0 : i32
    return %c0_i32, %c0_i32_0 : i32, i32
  }
  func.func @transform_3(%arg0: i32) -> (i32, i32) {
    %c0_i32 = arith.constant 0 : i32
    %c0_i32_0 = arith.constant 0 : i32
    return %arg0, %c0_i32 : i32, i32
  }
}

module attributes {stable_mosaic.version = 11 : i64} {
  func.func @_resident_kernel(%arg0: i32, %arg1: memref<16x32xf32, #tpu.memory_space<vmem>>, %arg2: memref<32x8xf32, #tpu.memory_space<vmem>>, %arg3: memref<1x8xf32, #tpu.memory_space<vmem>>, %arg4: memref<16x8xf32, #tpu.memory_space<vmem>>) attributes {dimension_semantics = [#tpu.dimension_semantics<parallel>], iteration_bounds = array<i64: 1>, scalar_prefetch = 0 : i64, scratch_operands = 0 : i64, tpu.core_type = #tpu.core_type<tc>, window_params = [{transform_indices = @transform_0, window_bounds = array<i64: 16, 32>}, {pipeline_mode = #tpu.pipeline_mode<synchronous>, transform_indices = @transform_1, window_bounds = array<i64: 32, 8>}, {pipeline_mode = #tpu.pipeline_mode<synchronous>, transform_indices = @transform_2, window_bounds = array<i64: 1, 8>}, {transform_indices = @transform_3, window_bounds = array<i64: 16, 8>}]} {
    %c0 = arith.constant 0 : index
    %c0_0 = arith.constant 0 : index
    %0 = vector.load %arg1[%c0, %c0_0] : memref<16x32xf32, #tpu.memory_space<vmem>>, vector<16x32xf32>
    %c0_1 = arith.constant 0 : index
    %c0_2 = arith.constant 0 : index
    %1 = vector.load %arg2[%c0_1, %c0_2] : memref<32x8xf32, #tpu.memory_space<vmem>>, vector<32x8xf32>
    %cst = arith.constant dense<0.000000e+00> : vector<16x8xf32>
    %2 = tpu.matmul %0, %1, %cst {dimension_numbers = #tpu.dot_dimension_numbers<[1], [0], [0], [1], [0, 0, 1, 1], [], []>} : vector<16x32xf32>, vector<32x8xf32>, vector<16x8xf32> -> vector<16x8xf32>
    %c0_3 = arith.constant 0 : index
    %c0_4 = arith.constant 0 : index
    %3 = vector.load %arg3[%c0_3, %c0_4] : memref<1x8xf32, #tpu.memory_space<vmem>>, vector<1x8xf32>
    %4 = vector.broadcast %3 : vector<1x8xf32> to vector<16x8xf32>
    %5 = arith.addf %2, %4 : vector<16x8xf32>
    %c0_5 = arith.constant 0 : index
    %c0_6 = arith.constant 0 : index
    %6 = vector.load %arg4[%c0_5, %c0_6] : memref<16x8xf32, #tpu.memory_space<vmem>>, vector<16x8xf32>
    tpu.vector_store %arg4[%c0_5, %c0_6], %5 {strides = array<i32>} : memref<16x8xf32, #tpu.memory_space<vmem>>, vector<16x8xf32>,
    return
  }
  func.func @transform_0(%arg0: i32) -> (i32, i32) {
    %c0_i32 = arith.constant 0 : i32
    %c0_i32_0 = arith.constant 0 : i32
    return %arg0, %c0_i32 : i32, i32
  }
  func.func @transform_1(%arg0: i32) -> (i32, i32) {
    %c0_i32 = arith.constant 0 : i32
    %c0_i32_0 = arith.constant 0 : i32
    %c0_i32_1 = arith.constant 0 : i32
    return %c0_i32, %c0_i32_0 : i32, i32
  }
  func.func @transform_2(%arg0: i32) -> (i32, i32) {
    %c0_i32 = arith.constant 0 : i32
    %c0_i32_0 = arith.constant 0 : i32
    %c0_i32_1 = arith.constant 0 : i32
    return %c0_i32, %c0_i32_0 : i32, i32
  }
  func.func @transform_3(%arg0: i32) -> (i32, i32) {
    %c0_i32 = arith.constant 0 : i32
    %c0_i32_0 = arith.constant 0 : i32
    return %arg0, %c0_i32 : i32, i32
  }
}

</mosaic_0001>

<llo_original>
// kernel: tpu_custom_call.1
$region0: #{tpu_custom_call.1}
  #allocation0 [shape = 'u32[]', space=smem, size = 0x4, offset = 0x4, fixed_abs, tag = 'smem constant byte address 0x4 - core index']
  #allocation1 [shape = 'u32[144,128]{1,0:T(1,128)}', space=vmem, size = 0x12000, scoped, tag = 'internal scratch']
  %s0 = inlined_call_operand.vmem [shape: f32[16,32], index: 0, kind: input, shape index: {}]
  %s1 = inlined_call_operand.vmem [shape: f32[32,8], index: 1, kind: input, shape index: {}]
  %s2 = inlined_call_operand.vmem [shape: f32[1,8], index: 2, kind: input, shape index: {}]
  %s3 = inlined_call_operand.vmem [shape: f32[16,8], index: 3, kind: output, shape index: {}]
  %s4 = sld [smem:[#allocation0]]
  $region22: #{tpu_custom_call.1} parent=0
    _
  %s6 = ssub.s32 1, %s4
  %s7 = scalar_select 0, %s6, %s4
  // Predicated region
  $region2: #{tpu_custom_call.1} parent=0 // pred_check
    _
  $region3: #{tpu_custom_call.1} parent=0 // pred_check_branch
    %9 = sbr.rel (0) target = $region5
  $region4: #{tpu_custom_call.1} parent=0 // pred_region
    _
  $region5: #{tpu_custom_call.1} parent=0 // pred_fallthru
    _
  // Predicated region
  $region6: #{tpu_custom_call.1} parent=0 // pred_check
    _
  $region7: #{tpu_custom_call.1} parent=0 // pred_check_branch
    %11 = sbr.rel (0) target = $region9
  $region8: #{tpu_custom_call.1} parent=0 // pred_region
    _
  $region9: #{tpu_custom_call.1} parent=0 // pred_fallthru
    _
  // Predicated region
  $region10: #{tpu_custom_call.1} parent=0 // pred_check
    _
  $region11: #{tpu_custom_call.1} parent=0 // pred_check_branch
    %13 = sbr.rel (0) target = $region13
  $region12: #{tpu_custom_call.1} parent=0 // pred_region
    _
  $region13: #{tpu_custom_call.1} parent=0 // pred_fallthru
    _
  %v14 = vld [vmem:[%s0] sm:$0xff]
  %v15 = vld [vmem:[%s0 + $0x8] sm:$0xff]
  %v16 = vld [vmem:[%s1] sm:$0xff]
  %v17 = vld [vmem:[%s1 + $0x8] sm:$0xff]
  %v18 = vld [vmem:[%s1 + $0x10] sm:$0xff]
  %v19 = vld [vmem:[%s1 + $0x18] sm:$0xff]
  %v20 = vld [vmem:[%s2] sm:$0x1]
  %v22 = vlaneseq
  %v23 = vshrl.u32 %v22, 7
  %v24 = vsub.s32 0, %v23
  %v25 = vrot.slane %v20, %v24
  %vm27 = vcmask 261120
  %v29 = vsel %vm27, %v14, 0
  %v32 = vsel %vm27, %v15, 0
  %34 = vmatprep.subr.mxu0 0.0
  %35 = vmatpush1.msra.mxu0 %v16
  %36 = vmatprep.subr.mxu0 0.0
  %37 = vmatpush1.msra.mxu0 %v17
  %38 = vmatprep.subr.mxu0 0.0
  %39 = vmatpush1.msra.mxu0 %v18
  %40 = vmatprep.subr.mxu0 0.0
  %41 = vmatpush1.msra.mxu0 %v19
  %42 = vmatprep.subr.mxu0 0.0
  %43 = vmatpush1.msra.mxu0 0.0
  %44 = vmatprep.subr.mxu0 0.0
  %45 = vmatpush1.msra.mxu0 0.0
  %46 = vmatprep.subr.mxu0 0.0
  %47 = vmatpush1.msra.mxu0 0.0
  %48 = vmatprep.subr.mxu0 0.0
  %49 = vmatpush1.msra.mxu0 0.0
  %50 = vmatprep.subr.mxu0 0.0
  %51 = vmatpush1.msra.mxu0 0.0
  %52 = vmatprep.subr.mxu0 0.0
  %53 = vmatpush1.msra.mxu0 0.0
  %54 = vmatprep.subr.mxu0 0.0
  %55 = vmatpush1.msra.mxu0 0.0
  %56 = vmatprep.subr.mxu0 0.0
  %57 = vmatpush1.msra.mxu0 0.0
  %58 = vmatprep.subr.mxu0 0.0
  %59 = vmatpush1.msra.mxu0 0.0
  %60 = vmatprep.subr.mxu0 0.0
  %61 = vmatpush1.msra.mxu0 0.0
  %62 = vmatprep.subr.mxu0 0.0
  %63 = vmatpush1.msra.mxu0 0.0
  %64 = vmatprep.subr.mxu0 0.0
  %65 = vmatpush1.msra.mxu0 0.0
  %66 = vmatprep.subr.mxu0 0.0
  %67 = vmatpush1.msra.mxu0 0.0
  %68 = vmatprep.subr.mxu0 0.0
  %69 = vmatpush1.msra.mxu0 0.0
  %70 = vmatprep.subr.mxu0 0.0
  %71 = vmatpush1.msra.mxu0 0.0
  %72 = vmatprep.subr.mxu0 0.0
  %73 = vmatpush1.msra.mxu0 0.0
  %74 = vmatprep.subr.mxu0 0.0
  %75 = vmatpush1.msra.mxu0 0.0
  %76 = vmatprep.subr.mxu0 0.0
  %77 = vmatpush1.msra.mxu0 0.0
  %78 = vmatprep.subr.mxu0 0.0
  %79 = vmatpush1.msra.mxu0 0.0
  %80 = vmatprep.subr.mxu0 0.0
  %81 = vmatpush1.msra.mxu0 0.0
  %82 = vmatprep.subr.mxu0 0.0
  %83 = vmatpush1.msra.mxu0 0.0
  %84 = vmatprep.subr.mxu0 0.0
  %85 = vmatpush1.msra.mxu0 0.0
  %86 = vmatprep.subr.mxu0 0.0
  %87 = vmatpush1.msra.mxu0 0.0
  %88 = vmatprep.subr.mxu0 0.0
  %89 = vmatpush1.msra.mxu0 0.0
  %90 = vmatprep.subr.mxu0 0.0
  %91 = vmatpush1.msra.mxu0 0.0
  %92 = vmatprep.subr.mxu0 0.0
  %93 = vmatpush1.msra.mxu0 0.0
  %94 = vmatprep.subr.mxu0 0.0
  %95 = vmatpush1.msra.mxu0 0.0
  %96 = vmatprep.subr.mxu0 0.0
  %97 = vmatpush1.msra.mxu0 0.0
  %98 = vmatprep.mubr.f32.mxu0 0.0
  %99 = vmatmul.mubr.f32.gmra.mrb[0].mxu0 %v29
  %v100 = vpop.f32.mrb[0].mxu0
  %v101 = vadd.f32 %v25, %v100
  %v102 = vpop.f32.mrb[0].mxu0
  %103 = vmatprep.mubr.f32.mxu0 0.0
  %104 = vmatmul.mubr.f32.gmra.mrb[0].mxu0 %v32
  %v105 = vpop.f32.mrb[0].mxu0
  %v106 = vadd.f32 %v25, %v105
  %v107 = vpop.f32.mrb[0].mxu0
  %108 = vdwg.mxu0
  %vm109 = vcmask 64512
  %110 = vst.msk [vmem:[%s3] sm:$0xff] %vm109, %v101
  %111 = vst.msk [vmem:[%s3 + $0x8] sm:$0xff] %vm109, %v106
  // Predicated region
  $region14: #{tpu_custom_call.1} parent=0 // pred_check
    _
  $region15: #{tpu_custom_call.1} parent=0 // pred_check_branch
    %113 = sbr.rel (0) target = $region17
  $region16: #{tpu_custom_call.1} parent=0 // pred_region
    _
  $region17: #{tpu_custom_call.1} parent=0 // pred_fallthru
    _
  // Predicated region
  $region18: #{tpu_custom_call.1} parent=0 // pred_check
    _
  $region19: #{tpu_custom_call.1} parent=0 // pred_check_branch
    %115 = sbr.rel (0) target = $region21
  $region20: #{tpu_custom_call.1} parent=0 // pred_region
    _
  $region21: #{tpu_custom_call.1} parent=0 // pred_fallthru
    _

// kernel: tpu_custom_call.1
$region0: #{tpu_custom_call.1}
  #allocation0 [shape = 'u32[]', space=smem, size = 0x4, offset = 0x4, fixed_abs, tag = 'smem constant byte address 0x4 - core index']
  #allocation1 [shape = 'u32[144,128]{1,0:T(1,128)}', space=vmem, size = 0x12000, scoped, tag = 'internal scratch']
  %s0 = inlined_call_operand.vmem [shape: f32[16,32], index: 0, kind: input, shape index: {}]
  %s1 = inlined_call_operand.vmem [shape: f32[32,8], index: 1, kind: input, shape index: {}]
  %s2 = inlined_call_operand.vmem [shape: f32[1,8], index: 2, kind: input, shape index: {}]
  %s3 = inlined_call_operand.vmem [shape: f32[16,8], index: 3, kind: output, shape index: {}]
  %s4 = sld [smem:[#allocation0]]
  $region22: #{tpu_custom_call.1} parent=0
    _
  %s6 = ssub.s32 1, %s4
  %s7 = scalar_select 0, %s6, %s4
  // Predicated region
  $region2: #{tpu_custom_call.1} parent=0 // pred_check
    _
  $region3: #{tpu_custom_call.1} parent=0 // pred_check_branch
    %9 = sbr.rel (0) target = $region5
  $region4: #{tpu_custom_call.1} parent=0 // pred_region
    _
  $region5: #{tpu_custom_call.1} parent=0 // pred_fallthru
    _
  // Predicated region
  $region6: #{tpu_custom_call.1} parent=0 // pred_check
    _
  $region7: #{tpu_custom_call.1} parent=0 // pred_check_branch
    %11 = sbr.rel (0) target = $region9
  $region8: #{tpu_custom_call.1} parent=0 // pred_region
    _
  $region9: #{tpu_custom_call.1} parent=0 // pred_fallthru
    _
  // Predicated region
  $region10: #{tpu_custom_call.1} parent=0 // pred_check
    _
  $region11: #{tpu_custom_call.1} parent=0 // pred_check_branch
    %13 = sbr.rel (0) target = $region13
  $region12: #{tpu_custom_call.1} parent=0 // pred_region
    _
  $region13: #{tpu_custom_call.1} parent=0 // pred_fallthru
    _
  %v14 = vld [vmem:[%s0] sm:$0xff]
  %v15 = vld [vmem:[%s0 + $0x8] sm:$0xff]
  %v16 = vld [vmem:[%s1] sm:$0xff]
  %v17 = vld [vmem:[%s1 + $0x8] sm:$0xff]
  %v18 = vld [vmem:[%s1 + $0x10] sm:$0xff]
  %v19 = vld [vmem:[%s1 + $0x18] sm:$0xff]
  %v20 = vld [vmem:[%s2] sm:$0x1]
  %v22 = vlaneseq
  %v23 = vshrl.u32 %v22, 7
  %v24 = vsub.s32 0, %v23
  %v25 = vrot.slane %v20, %v24
  %vm27 = vcmask 261120
  %v29 = vsel %vm27, %v14, 0
  %v32 = vsel %vm27, %v15, 0
  %34 = vmatprep.subr.mxu0 0.0
  %35 = vmatpush1.msra.mxu0 %v16
  %36 = vmatprep.subr.mxu0 0.0
  %37 = vmatpush1.msra.mxu0 %v17
  %38 = vmatprep.subr.mxu0 0.0
  %39 = vmatpush1.msra.mxu0 %v18
  %40 = vmatprep.subr.mxu0 0.0
  %41 = vmatpush1.msra.mxu0 %v19
  %42 = vmatprep.subr.mxu0 0.0
  %43 = vmatpush1.msra.mxu0 0.0
  %44 = vmatprep.subr.mxu0 0.0
  %45 = vmatpush1.msra.mxu0 0.0
  %46 = vmatprep.subr.mxu0 0.0
  %47 = vmatpush1.msra.mxu0 0.0
  %48 = vmatprep.subr.mxu0 0.0
  %49 = vmatpush1.msra.mxu0 0.0
  %50 = vmatprep.subr.mxu0 0.0
  %51 = vmatpush1.msra.mxu0 0.0
  %52 = vmatprep.subr.mxu0 0.0
  %53 = vmatpush1.msra.mxu0 0.0
  %54 = vmatprep.subr.mxu0 0.0
  %55 = vmatpush1.msra.mxu0 0.0
  %56 = vmatprep.subr.mxu0 0.0
  %57 = vmatpush1.msra.mxu0 0.0
  %58 = vmatprep.subr.mxu0 0.0
  %59 = vmatpush1.msra.mxu0 0.0
  %60 = vmatprep.subr.mxu0 0.0
  %61 = vmatpush1.msra.mxu0 0.0
  %62 = vmatprep.subr.mxu0 0.0
  %63 = vmatpush1.msra.mxu0 0.0
  %64 = vmatprep.subr.mxu0 0.0
  %65 = vmatpush1.msra.mxu0 0.0
  %66 = vmatprep.subr.mxu0 0.0
  %67 = vmatpush1.msra.mxu0 0.0
  %68 = vmatprep.subr.mxu0 0.0
  %69 = vmatpush1.msra.mxu0 0.0
  %70 = vmatprep.subr.mxu0 0.0
  %71 = vmatpush1.msra.mxu0 0.0
  %72 = vmatprep.subr.mxu0 0.0
  %73 = vmatpush1.msra.mxu0 0.0
  %74 = vmatprep.subr.mxu0 0.0
  %75 = vmatpush1.msra.mxu0 0.0
  %76 = vmatprep.subr.mxu0 0.0
  %77 = vmatpush1.msra.mxu0 0.0
  %78 = vmatprep.subr.mxu0 0.0
  %79 = vmatpush1.msra.mxu0 0.0
  %80 = vmatprep.subr.mxu0 0.0
  %81 = vmatpush1.msra.mxu0 0.0
  %82 = vmatprep.subr.mxu0 0.0
  %83 = vmatpush1.msra.mxu0 0.0
  %84 = vmatprep.subr.mxu0 0.0
  %85 = vmatpush1.msra.mxu0 0.0
  %86 = vmatprep.subr.mxu0 0.0
  %87 = vmatpush1.msra.mxu0 0.0
  %88 = vmatprep.subr.mxu0 0.0
  %89 = vmatpush1.msra.mxu0 0.0
  %90 = vmatprep.subr.mxu0 0.0
  %91 = vmatpush1.msra.mxu0 0.0
  %92 = vmatprep.subr.mxu0 0.0
  %93 = vmatpush1.msra.mxu0 0.0
  %94 = vmatprep.subr.mxu0 0.0
  %95 = vmatpush1.msra.mxu0 0.0
  %96 = vmatprep.subr.mxu0 0.0
  %97 = vmatpush1.msra.mxu0 0.0
  %98 = vmatprep.mubr.f32.mxu0 0.0
  %99 = vmatmul.mubr.f32.gmra.mrb[0].mxu0 %v29
  %v100 = vpop.f32.mrb[0].mxu0
  %v101 = vadd.f32 %v25, %v100
  %v102 = vpop.f32.mrb[0].mxu0
  %103 = vmatprep.mubr.f32.mxu0 0.0
  %104 = vmatmul.mubr.f32.gmra.mrb[0].mxu0 %v32
  %v105 = vpop.f32.mrb[0].mxu0
  %v106 = vadd.f32 %v25, %v105
  %v107 = vpop.f32.mrb[0].mxu0
  %108 = vdwg.mxu0
  %vm109 = vcmask 64512
  %110 = vst.msk [vmem:[%s3] sm:$0xff] %vm109, %v101
  %111 = vst.msk [vmem:[%s3 + $0x8] sm:$0xff] %vm109, %v106
  // Predicated region
  $region14: #{tpu_custom_call.1} parent=0 // pred_check
    _
  $region15: #{tpu_custom_call.1} parent=0 // pred_check_branch
    %113 = sbr.rel (0) target = $region17
  $region16: #{tpu_custom_call.1} parent=0 // pred_region
    _
  $region17: #{tpu_custom_call.1} parent=0 // pred_fallthru
    _
  // Predicated region
  $region18: #{tpu_custom_call.1} parent=0 // pred_check
    _
  $region19: #{tpu_custom_call.1} parent=0 // pred_check_branch
    %115 = sbr.rel (0) target = $region21
  $region20: #{tpu_custom_call.1} parent=0 // pred_region
    _
  $region21: #{tpu_custom_call.1} parent=0 // pred_fallthru
    _

</llo_original>
